<compile_context>
chip_gen: v6e
topology: v6e:2x2x1
jax: 0.10.0
libtpu: 0.0.40
codegen_flags: <defaults>
</compile_context>

<pallas_src>
import jax
import jax.numpy as jnp
from jax import lax
from jax.experimental import pallas as pl
from jax.experimental.pallas import tpu as pltpu


N_HEADS = 14
IN_FEATURES = 128
OUT_FEATURES = 2
N_OUT = N_HEADS * OUT_FEATURES  # 28


def _heads_kernel(x_ref, w_ref, b_ref, o_ref):
    # x_ref: (tb, 128) caller dtype; w_ref: (28, 128); b_ref: (28, 1) f32
    # o_ref: (28, tb) f32   -- lane-dense output block
    x = x_ref[...].astype(jnp.bfloat16)   # VPU cast, hidden under the x DMA
    w = w_ref[...].astype(jnp.bfloat16)
    # (28, 128) @ (tb, 128)^T -> (28, tb), f32 accumulation on the MXU.
    acc = lax.dot_general(
        w, x,
        dimension_numbers=(((1,), (1,)), ((), ())),
        preferred_element_type=jnp.float32,
    )
    o_ref[...] = acc + b_ref[...]          # (28, 1) bias broadcast over lanes


def _pick_batch_tile(batch, block_b):
    """Batch tile honoring the (8,128) block rules.

    Aims for >= 2 grid steps (tile = multiple of 128) so the 'parallel' grid
    axis can be sharded across v7x's two TensorCores; tiny batches fall back
    to a single full-extent block (always legal).
    """
    if batch <= 256:
        return batch
    half = pl.cdiv(batch, 2)
    tb = ((half + 127) // 128) * 128       # lane-dense out block needs %128==0
    return min(block_b, tb)


def output_layer_forward(x, w_heads, b_heads, *, block_b=8192, layout="torch"):
    """Forward pass of `outputLayer`.

    x:        (B, 128) activations (any float dtype; f32 matches torch).
    w_heads:  (14, 2, 128) per-head torch-style Linear.weight.
    b_heads:  (14, 2)      per-head torch-style Linear.bias.

    layout="torch"  -> (14, B, 2), exactly torch.stack([o1..o14]).
    layout="native" -> (14, 2, B), free view of the kernel output (no extra
                       HBM permutation); preferred for downstream perf.
    """
    B, F = x.shape
    assert F == IN_FEATURES, "outputLayer expects 128 input features"

    w_t = w_heads.reshape(N_OUT, IN_FEATURES)              # (28, 128), free view
    b_col = b_heads.reshape(N_OUT, 1).astype(jnp.float32)  # (28, 1)

    tb = _pick_batch_tile(B, block_b)
    grid = (pl.cdiv(B, tb),)

    cost = pl.CostEstimate(
        flops=2 * B * IN_FEATURES * N_OUT,
        transcendentals=0,
        bytes_accessed=(
            B * IN_FEATURES * x.dtype.itemsize       # x read (native dtype)
            + N_OUT * IN_FEATURES * w_t.dtype.itemsize
            + N_OUT * 4                              # bias
            + N_OUT * B * 4                          # f32 output write
        ),
    )

    out = pl.pallas_call(
        _heads_kernel,
        out_shape=jax.ShapeDtypeStruct((N_OUT, B), jnp.float32),
        grid_spec=pltpu.PrefetchScalarGridSpec(
            num_scalar_prefetch=0,
            grid=grid,
            in_specs=[
                pl.BlockSpec((tb, IN_FEATURES), lambda i: (i, 0)),   # x: batch-tiled
                pl.BlockSpec((N_OUT, IN_FEATURES), lambda i: (0, 0)),  # fused W: resident
                pl.BlockSpec((N_OUT, 1), lambda i: (0, 0)),            # fused bias
            ],
            out_specs=pl.BlockSpec((N_OUT, tb), lambda i: (0, i)),     # lane-dense
        ),
        compiler_params=pltpu.CompilerParams(
            dimension_semantics=("parallel",),       # megacore-shardable on v7x
            vmem_limit_bytes=32 * 1024 * 1024,       # safe on all generations
        ),
        cost_estimate=cost,
    )(x, w_t, b_col)

    if layout == "native":
        # Free reshape view: (heads, out, batch). No extra HBM traffic.
        return out.reshape(N_HEADS, OUT_FEATURES, B)
    # Exact torch.stack([o1..o14]) layout: (14, B, 2). One wrapper permutation.
    return jnp.transpose(out.reshape(N_HEADS, OUT_FEATURES, B), (0, 2, 1))


def init_params(key):
    """Deterministic PyTorch-style uniform init for the 14 Linear(128, 2) heads."""
    bound = 1.0 / jnp.sqrt(jnp.float32(IN_FEATURES))
    kw, kb = jax.random.split(key)
    w = jax.random.uniform(
        kw, (N_HEADS, OUT_FEATURES, IN_FEATURES), jnp.float32, -bound, bound)
    b = jax.random.uniform(
        kb, (N_HEADS, OUT_FEATURES), jnp.float32, -bound, bound)
    return w, b


def _reference(x, w_heads, b_heads):
    """Pure-JAX reference using the kernel's bf16-input / f32-accum numerics."""
    xb = x.astype(jnp.bfloat16).astype(jnp.float32)
    wb = w_heads.astype(jnp.bfloat16).astype(jnp.float32)
    outs = [xb @ wb[h].T + b_heads[h] for h in range(N_HEADS)]
    return jnp.stack(outs)  # (14, B, 2)


if __name__ == "__main__":
    key = jax.random.PRNGKey(0)
    k_p, k_x1, k_x2 = jax.random.split(key, 3)
    w_heads, b_heads = init_params(k_p)

    # Small-shape check (single full-extent block path), torch-exact layout.
    B = 8
    x = jax.random.normal(k_x1, (B, IN_FEATURES), jnp.float32)
    out = jax.block_until_ready(output_layer_forward(x, w_heads, b_heads))
    ref = _reference(x, w_heads, b_heads)
    assert out.shape == (N_HEADS, B, OUT_FEATURES), out.shape
    assert jnp.allclose(out, ref, atol=1e-3, rtol=1e-3), "mismatch (B=8)"

    # Multi-step grid (2 blocks, last one partial) + kernel-native layout.
    B2 = 300
    x2 = jax.random.normal(k_x2, (B2, IN_FEATURES), jnp.float32)
    out2 = jax.block_until_ready(
        output_layer_forward(x2, w_heads, b_heads, layout="native"))
    ref2 = _reference(x2, w_heads, b_heads)            # (14, B2, 2)
    assert out2.shape == (N_HEADS, OUT_FEATURES, B2), out2.shape
    assert jnp.allclose(jnp.transpose(out2, (0, 2, 1)), ref2,
                        atol=1e-3, rtol=1e-3), "mismatch (B=300)"

    print("KERNEL_OK")
</pallas_src>

<mosaic_0001>
module attributes {stable_mosaic.version = 11 : i64} {
  func.func @_heads_kernel(%arg0: i32, %arg1: memref<8x128xf32, #tpu.memory_space<vmem>>, %arg2: memref<28x128xf32, #tpu.memory_space<vmem>>, %arg3: memref<28x1xf32, #tpu.memory_space<vmem>>, %arg4: memref<28x8xf32, #tpu.memory_space<vmem>>) attributes {dimension_semantics = [#tpu.dimension_semantics<parallel>], iteration_bounds = array<i64: 1>, scalar_prefetch = 0 : i64, scratch_operands = 0 : i64, tpu.core_type = #tpu.core_type<tc>, window_params = [{transform_indices = @transform_0, window_bounds = array<i64: 8, 128>}, {pipeline_mode = #tpu.pipeline_mode<synchronous>, transform_indices = @transform_1, window_bounds = array<i64: 28, 128>}, {pipeline_mode = #tpu.pipeline_mode<synchronous>, transform_indices = @transform_2, window_bounds = array<i64: 28, 1>}, {transform_indices = @transform_3, window_bounds = array<i64: 28, 8>}]} {
    %c0 = arith.constant 0 : index
    %c0_0 = arith.constant 0 : index
    %0 = vector.load %arg1[%c0, %c0_0] : memref<8x128xf32, #tpu.memory_space<vmem>>, vector<8x128xf32>
    %1 = arith.truncf %0 : vector<8x128xf32> to vector<8x128xbf16>
    %c0_1 = arith.constant 0 : index
    %c0_2 = arith.constant 0 : index
    %2 = vector.load %arg2[%c0_1, %c0_2] : memref<28x128xf32, #tpu.memory_space<vmem>>, vector<28x128xf32>
    %3 = arith.truncf %2 : vector<28x128xf32> to vector<28x128xbf16>
    %cst = arith.constant dense<0.000000e+00> : vector<28x8xf32>
    %4 = tpu.matmul %3, %1, %cst {dimension_numbers = #tpu.dot_dimension_numbers<[1], [1], [0], [0], [0, 0, 1, 0], [], []>} : vector<28x128xbf16>, vector<8x128xbf16>, vector<28x8xf32> -> vector<28x8xf32>
    %c0_3 = arith.constant 0 : index
    %c0_4 = arith.constant 0 : index
    %5 = vector.load %arg3[%c0_3, %c0_4] : memref<28x1xf32, #tpu.memory_space<vmem>>, vector<28x1xf32>
    %6 = vector.broadcast %5 : vector<28x1xf32> to vector<28x8xf32>
    %7 = arith.addf %4, %6 : vector<28x8xf32>
    %c0_5 = arith.constant 0 : index
    %c0_6 = arith.constant 0 : index
    %8 = vector.load %arg4[%c0_5, %c0_6] : memref<28x8xf32, #tpu.memory_space<vmem>>, vector<28x8xf32>
    tpu.vector_store %arg4[%c0_5, %c0_6], %7 {strides = array<i32>} : memref<28x8xf32, #tpu.memory_space<vmem>>, vector<28x8xf32>,
    return
  }
  func.func @transform_0(%arg0: i32) -> (i32, i32) {
    %c0_i32 = arith.constant 0 : i32
    %c0_i32_0 = arith.constant 0 : i32
    return %arg0, %c0_i32 : i32, i32
  }
  func.func @transform_1(%arg0: i32) -> (i32, i32) {
    %c0_i32 = arith.constant 0 : i32
    %c0_i32_0 = arith.constant 0 : i32
    %c0_i32_1 = arith.constant 0 : i32
    return %c0_i32, %c0_i32_0 : i32, i32
  }
  func.func @transform_2(%arg0: i32) -> (i32, i32) {
    %c0_i32 = arith.constant 0 : i32
    %c0_i32_0 = arith.constant 0 : i32
    %c0_i32_1 = arith.constant 0 : i32
    return %c0_i32, %c0_i32_0 : i32, i32
  }
  func.func @transform_3(%arg0: i32) -> (i32, i32) {
    %c0_i32 = arith.constant 0 : i32
    %c0_i32_0 = arith.constant 0 : i32
    return %c0_i32, %arg0 : i32, i32
  }
}

</mosaic_0001>

<llo_original>
// kernel: tpu_custom_call.1
$region0: #{tpu_custom_call.1}
  #allocation0 [shape = 'u32[]', space=smem, size = 0x4, offset = 0x4, fixed_abs, tag = 'smem constant byte address 0x4 - core index']
  #allocation1 [shape = 'u32[144,128]{1,0:T(1,128)}', space=vmem, size = 0x12000, scoped, tag = 'internal scratch']
  %s0 = inlined_call_operand.hbm [shape: f32[8,128], index: 0, kind: input, shape index: {}]
  %s1 = inlined_call_operand.vmem [shape: f32[28,128], index: 1, kind: input, shape index: {}]
  %s2 = inlined_call_operand.vmem [shape: f32[28,1], index: 2, kind: input, shape index: {}]
  %s3 = inlined_call_operand.vmem [shape: f32[28,8], index: 3, kind: output, shape index: {}]
  %s4 = sld [smem:[#allocation0]]
  $region26: #{tpu_custom_call.1} parent=0
    _
  %s6 = ssub.s32 1, %s4
  %s7 = scalar_select 0, %s6, %s4
  $region1: #{tpu_custom_call.1} parent=0
    #allocation2 [shape = 'u8[4096]{0}', space=vmem, size = 0x1000, scoped, tag = 'input window, operand 0, single buffered']
    #allocation3 [shape = 's32[1]{0}', space=sflag, size = 0x4, scoped, tag = 'scoped memory for tpu_custom_call.1']
    %8 = vsyncpa [#allocation3], 0
    // Predicated region
    $region2: #{tpu_custom_call.1} parent=1 // pred_check
      _
    $region3: #{tpu_custom_call.1} parent=1 // pred_check_branch
      %10 = sbr.rel (0) target = $region5
    $region4: #{tpu_custom_call.1} parent=1 // pred_region
      %s12 = ssub.s32 128, 128
      %13 = vsyncadd [#allocation3], %s12
      %s15 = sshll.u32 [#allocation2], 4
      %s16 = int_to_ptr.vmem [resolvable:$true] %s15
      %18 = dma.hbm_to_vmem [thread:$0]  %s0, 128, %s16, [#allocation3]
    $region5: #{tpu_custom_call.1} parent=1 // pred_fallthru
      _
    // Predicated region
    $region6: #{tpu_custom_call.1} parent=1 // pred_check
      _
    $region7: #{tpu_custom_call.1} parent=1 // pred_check_branch
      %20 = sbr.rel (0) target = $region9
    $region8: #{tpu_custom_call.1} parent=1 // pred_region
      _
    $region9: #{tpu_custom_call.1} parent=1 // pred_fallthru
      _
    // Predicated region
    $region10: #{tpu_custom_call.1} parent=1 // pred_check
      _
    $region11: #{tpu_custom_call.1} parent=1 // pred_check_branch
      %22 = sbr.rel (0) target = $region13
    $region12: #{tpu_custom_call.1} parent=1 // pred_region
      _
    $region13: #{tpu_custom_call.1} parent=1 // pred_fallthru
      _
    // Predicated region
    $region14: #{tpu_custom_call.1} parent=1 // pred_check
      _
    $region15: #{tpu_custom_call.1} parent=1 // pred_check_branch
      %24 = sbr.rel (0) target = $region17
    $region16: #{tpu_custom_call.1} parent=1 // pred_region
      %25 = dma.done [#allocation3], 128
    $region17: #{tpu_custom_call.1} parent=1 // pred_fallthru
      _
    %v27 = vld [vmem:[#allocation2] sm:$0xff]
    %v28 = vpack.c.bf16 %v27, %v27
    %v29 = vld [vmem:[%s1] sm:$0xff]
    %v30 = vld [vmem:[%s1 + $0x8] sm:$0xff]
    %v31 = vld [vmem:[%s1 + $0x10] sm:$0xff]
    %v32 = vld [vmem:[%s1 + $0x18] sm:$0xf]
    %v33 = vpack.c.bf16 %v30, %v29
    %v34 = vpack.c.bf16 %v32, %v31
    %v35 = vld [vmem:[%s2] sm:$0xff]
    %v36 = vld [vmem:[%s2 + $0x8] sm:$0xff]
    %v37 = vld [vmem:[%s2 + $0x10] sm:$0xff]
    %v38 = vld [vmem:[%s2 + $0x18] sm:$0xf]
    %40 = vset.pattern.permute.xlu0 0
    %41 = vperm.xlu0 %40, %v35
    %v42 = vpop.permute.xlu0 %41
    %45 = vset.pattern.permute.xlu0 0
    %46 = vperm.xlu0 %45, %v36
    %v47 = vpop.permute.xlu0 %46
    %50 = vset.pattern.permute.xlu0 0
    %51 = vperm.xlu0 %50, %v37
    %v52 = vpop.permute.xlu0 %51
    %55 = vset.pattern.permute.xlu0 0
    %56 = vperm.xlu0 %55, %v38
    %v57 = vpop.permute.xlu0 %56
    %59 = vmatprep.subr.bf16.mxu0 0
    %60 = vmatpush1.bf16.xpose.msra.mxu0 0
    %61 = vmatprep.subr.bf16.mxu0 0
    %62 = vmatpush1.bf16.xpose.msra.mxu0 0
    %63 = vmatprep.subr.bf16.mxu0 0
    %64 = vmatpush1.bf16.xpose.msra.mxu0 0
    %65 = vmatprep.subr.bf16.mxu0 0
    %66 = vmatpush1.bf16.xpose.msra.mxu0 0
    %67 = vmatprep.subr.bf16.mxu0 0
    %68 = vmatpush1.bf16.xpose.msra.mxu0 0
    %69 = vmatprep.subr.bf16.mxu0 0
    %70 = vmatpush1.bf16.xpose.msra.mxu0 0
    %71 = vmatprep.subr.bf16.mxu0 0
    %72 = vmatpush1.bf16.xpose.msra.mxu0 0
    %73 = vmatprep.subr.bf16.mxu0 0
    %74 = vmatpush1.bf16.xpose.msra.mxu0 %v28
    %75 = vmatprep.subr.bf16.mxu0 0
    %76 = vmatpush2.bf16.xpose.msra.mxu0 0
    %77 = vmatprep.subr.bf16.mxu0 0
    %78 = vmatpush2.bf16.xpose.msra.mxu0 0
    %79 = vmatprep.subr.bf16.mxu0 0
    %80 = vmatpush2.bf16.xpose.msra.mxu0 0
    %81 = vmatprep.subr.bf16.mxu0 0
    %82 = vmatpush2.bf16.xpose.msra.mxu0 0
    %83 = vmatprep.subr.bf16.mxu0 0
    %84 = vmatpush2.bf16.xpose.msra.mxu0 0
    %85 = vmatprep.subr.bf16.mxu0 0
    %86 = vmatpush2.bf16.xpose.msra.mxu0 0
    %87 = vmatprep.subr.bf16.mxu0 0
    %88 = vmatpush2.bf16.xpose.msra.mxu0 0
    %89 = vmatprep.subr.bf16.mxu0 0
    %90 = vmatpush2.bf16.xpose.msra.mxu0 0
    %91 = vmatprep.mubr.bf16.mxu0 0
    %92 = vmatmul.mubr.bf16.gmra.mxu0 %v33
    %v93 = vpop.f32.mrf.mxu0
    %v94 = vadd.f32 %v42, %v93
    %v95 = vpop.f32.mrf.mxu0
    %v96 = vpop.f32.mrf.mxu0
    %v97 = vadd.f32 %v47, %v96
    %v98 = vpop.f32.mrf.mxu0
    %99 = vmatprep.mubr.bf16.mxu0 0
    %100 = vmatmul.mubr.bf16.gmra.mxu0 %v34
    %v101 = vpop.f32.mrf.mxu0
    %v102 = vadd.f32 %v52, %v101
    %v103 = vpop.f32.mrf.mxu0
    %v104 = vpop.f32.mrf.mxu0
    %v105 = vadd.f32 %v57, %v104
    %v106 = vpop.f32.mrf.mxu0
    %107 = vdwg.mxu0
    %vm108 = vcmask 64512
    %109 = vst.msk [vmem:[%s3] sm:$0xff] %vm108, %v94
    %110 = vst.msk [vmem:[%s3 + $0x8] sm:$0xff] %vm108, %v97
    %111 = vst.msk [vmem:[%s3 + $0x10] sm:$0xff] %vm108, %v102
    %vm112 = vcmask 60416
    %113 = vst.msk [vmem:[%s3 + $0x18] sm:$0xf] %vm112, %v105
    // Predicated region
    $region18: #{tpu_custom_call.1} parent=1 // pred_check
      _
    $region19: #{tpu_custom_call.1} parent=1 // pred_check_branch
      %115 = sbr.rel (0) target = $region21
    $region20: #{tpu_custom_call.1} parent=1 // pred_region
      _
    $region21: #{tpu_custom_call.1} parent=1 // pred_fallthru
      _
    // Predicated region
    $region22: #{tpu_custom_call.1} parent=1 // pred_check
      _
    $region23: #{tpu_custom_call.1} parent=1 // pred_check_branch
      %117 = sbr.rel (0) target = $region25
    $region24: #{tpu_custom_call.1} parent=1 // pred_region
      _
    $region25: #{tpu_custom_call.1} parent=1 // pred_fallthru
      _
    %118 = vsyncpa [#allocation3], 1

</llo_original>
